<compile_context>
chip_gen: v7x
topology: tpu7x:2x2x1
jax: 0.10.0
libtpu: 0.0.40
codegen_flags: <defaults>
</compile_context>

<pallas_src>
import jax
import jax.numpy as jnp
import numpy as np
from jax.experimental import pallas as pl
from jax.experimental.pallas import tpu as pltpu

_LANES = 128            # vreg lane width; the last dim stays a multiple of this
_MAX_BLOCK_ROWS = 1024  # ~512 KiB/block for f32 -> ~2 MiB peak VMEM with
                        # double-buffered in+out; safe on v7x (64 MiB VMEM) and
                        # well under the 32 MiB scoped default on all gens.
_TINY_BYTES = 1 << 20   # below ~1 MiB, launch + DMA overhead dominates an identity


def _copy_kernel(x_ref, o_ref):
    # Full-tile pass-through. Blocks are (sublane-multiple, 128), so this lowers
    # to full-width unmasked vector loads/stores (no vst.msk partial stores).
    o_ref[...] = x_ref[...]


def _sublanes_for(dtype) -> int:
    # 8 sublanes/vreg for 32-bit dtypes; sub-32-bit dtypes pack along sublanes
    # (16 for bf16/f16, 32 for int8/fp8).
    itemsize = jnp.dtype(dtype).itemsize
    return max(8, 32 // max(itemsize, 1))


def _pallas_identity(x: jax.Array, *, force_kernel: bool = False) -> jax.Array:
    """Placeholder Pallas call that copies x (validates the TPU kernel path).

    Lane-dense, sublane-aligned, rows-tiled formulation:
      * flatten to (rows, 128) with rows a multiple of the packed sublane count,
      * 1-D "parallel" grid over row blocks (pipelined DMA, megacore-shardable),
      * no input/output aliasing (avoids donated-buffer hazards; the HBM
        writeback of the output happens either way).
    """
    if x.size == 0:
        return x  # a (0, 128) block does not lower cleanly; nothing to copy anyway
    if not force_kernel and x.nbytes < _TINY_BYTES:
        # Tiny payloads are 100% launch/DMA overhead for an identity copy.
        return x

    orig_shape = x.shape
    total = x.size
    itemsize = jnp.dtype(x.dtype).itemsize
    sublanes = _sublanes_for(x.dtype)

    # Block rows: large enough to amortize the ~0.35 us per-grid-step overhead,
    # capped for VMEM, and always a multiple of the sublane count.
    rows_needed = -(-total // _LANES)
    block_rows = min(_MAX_BLOCK_ROWS, -(-rows_needed // sublanes) * sublanes)
    block_elems = block_rows * _LANES

    # Pad the flattened length up to a whole number of blocks. In the common
    # case (total % block_elems == 0) this is a free reshape — no jnp.pad /
    # extra HBM copy before the kernel and no trailing slice after it.
    # TODO(synk): for large ragged tails, a masked store on the last block
    # would avoid the pad copy entirely.
    padded_total = -(-total // block_elems) * block_elems
    pad = padded_total - total
    x_flat = x.reshape(-1)
    if pad:
        x_flat = jnp.pad(x_flat, (0, pad))
    rows = padded_total // _LANES
    num_blocks = rows // block_rows
    x2d = x_flat.reshape(rows, _LANES)

    y2d = pl.pallas_call(
        _copy_kernel,
        out_shape=jax.ShapeDtypeStruct((rows, _LANES), x.dtype),
        grid_spec=pltpu.PrefetchScalarGridSpec(
            num_scalar_prefetch=0,
            grid=(num_blocks,),
            in_specs=[pl.BlockSpec((block_rows, _LANES), lambda i: (i, 0))],
            out_specs=pl.BlockSpec((block_rows, _LANES), lambda i: (i, 0)),
        ),
        compiler_params=pltpu.CompilerParams(
            # Row blocks are independent: "parallel" lets megacore (v7x: 2 TCs)
            # shard the mem-bound copy across TensorCores once num_blocks > 1.
            dimension_semantics=("parallel",),
        ),
        # Purely bandwidth-bound custom call: give XLA's scheduler the traffic.
        cost_estimate=pl.CostEstimate(
            flops=0,
            transcendentals=0,
            bytes_accessed=2 * padded_total * itemsize,
        ),
    )(x2d)

    y = y2d.reshape(-1)
    if pad:
        y = y[:total]
    return y.reshape(orig_shape)


class DeformableDecoder1D:
    """JAX port of the (stub) PyTorch DeformableDecoder1D.

    The PyTorch reference:
        def __init__(self): super().__init__()   # no parameters
        def forward(self):  pass                 # no inputs, returns None
    """

    def __init__(self) -> None:
        # TODO(synk): reference __init__ declares no parameters/weights; nothing
        # to initialize deterministically.
        pass

    def forward(self):
        # TODO(synk): reference forward() is an empty stub (`pass`); there is no
        # offset-prediction / softmax / deformable-gather / projection hot path
        # to lower into Pallas. Returning None reproduces PyTorch semantics.
        # When a real forward exists, the plan is: offset/attn-weight
        # projections as MXU matmuls (128/256-aligned tiles, f32 scratch
        # accumulation), softmax denom via pl.reciprocal(approx=True), and the
        # deformable gather driven by PrefetchScalarGridSpec scalar-prefetched
        # indices or a manual make_async_copy double-buffer.
        return None

    __call__ = forward


if __name__ == "__main__":
    # Deterministic small synthetic input: batch=2, seq=8, hidden=32.
    key = jax.random.PRNGKey(0)
    x = jax.random.normal(key, (2, 8, 32), dtype=jnp.float32)

    # 1) Module semantics: forward() takes no inputs and returns None, exactly
    #    like the PyTorch reference.
    module = DeformableDecoder1D()
    out = module()
    assert out is None, "DeformableDecoder1D.forward must return None (stub semantics)"

    # 2) Exercise the Pallas TPU kernel path once (placeholder identity kernel).
    #    force_kernel=True bypasses the tiny-payload short circuit so the
    #    pallas_call actually runs on this 2 KiB test tensor.
    x_host = np.asarray(jax.device_get(x))

    y = _pallas_identity(x, force_kernel=True)
    y = jax.block_until_ready(y)

    assert y.shape == x.shape and y.dtype == x.dtype
    assert np.allclose(np.asarray(jax.device_get(y)), x_host), "Pallas identity kernel mismatch"

    print("KERNEL_OK")
</pallas_src>

<mosaic_0001>
module attributes {stable_mosaic.version = 11 : i64} {
  func.func @_copy_kernel(%arg0: i32, %arg1: memref<8x128xf32, #tpu.memory_space<vmem>>, %arg2: memref<8x128xf32, #tpu.memory_space<vmem>>) attributes {dimension_semantics = [#tpu.dimension_semantics<parallel>], iteration_bounds = array<i64: 1>, scalar_prefetch = 0 : i64, scratch_operands = 0 : i64, tpu.core_type = #tpu.core_type<tc>, window_params = [{transform_indices = @transform_0, window_bounds = array<i64: 8, 128>}, {transform_indices = @transform_1, window_bounds = array<i64: 8, 128>}]} {
    %c0 = arith.constant 0 : index
    %c0_0 = arith.constant 0 : index
    %0 = vector.load %arg1[%c0, %c0_0] : memref<8x128xf32, #tpu.memory_space<vmem>>, vector<8x128xf32>
    %c0_1 = arith.constant 0 : index
    %c0_2 = arith.constant 0 : index
    %1 = vector.load %arg2[%c0_1, %c0_2] : memref<8x128xf32, #tpu.memory_space<vmem>>, vector<8x128xf32>
    tpu.vector_store %arg2[%c0_1, %c0_2], %0 {strides = array<i32>} : memref<8x128xf32, #tpu.memory_space<vmem>>, vector<8x128xf32>,
    return
  }
  func.func @transform_0(%arg0: i32) -> (i32, i32) {
    %c0_i32 = arith.constant 0 : i32
    %c0_i32_0 = arith.constant 0 : i32
    return %arg0, %c0_i32 : i32, i32
  }
  func.func @transform_1(%arg0: i32) -> (i32, i32) {
    %c0_i32 = arith.constant 0 : i32
    %c0_i32_0 = arith.constant 0 : i32
    return %arg0, %c0_i32 : i32, i32
  }
}

</mosaic_0001>

<llo_original>
// kernel: tpu_custom_call.1
$region0: #{tpu_custom_call.1}
  #allocation0 [shape = 'u32[]', space=smem, size = 0x4, offset = 0x4, fixed_abs, tag = 'smem constant byte address 0x4 - core index']
  #allocation1 [shape = 'u32[144,128]{1,0:T(1,128)}', space=vmem, size = 0x12000, scoped, tag = 'internal scratch']
  %s0 = inlined_call_operand.hbm [shape: f32[8,128], index: 0, kind: input, shape index: {}]
  %s1 = inlined_call_operand.hbm [shape: f32[8,128], index: 1, kind: output, shape index: {}]
  %s2 = sld [smem:[#allocation0]]
  $region18: #{tpu_custom_call.1} parent=0
    _
  %s4 = ssub.s32 1, %s2
  %s5 = scalar_select 0, %s4, %s2
  $region1: #{tpu_custom_call.1} parent=0
    #allocation2 [shape = 'u8[4096]{0}', space=vmem, size = 0x1000, scoped, tag = 'input window, operand 0, single buffered']
    #allocation3 [shape = 's32[1]{0}', space=sflag, size = 0x4, scoped, tag = 'scoped memory for tpu_custom_call.1']
    #allocation4 [shape = 's32[1]{0}', space=sflag, size = 0x4, scoped, tag = 'scoped memory for tpu_custom_call.1']
    #allocation5 [shape = 'u8[4096]{0}', space=vmem, size = 0x1000, scoped, tag = 'output window, operand 0, single buffered']
    %6 = vsyncpa [#allocation3], 0
    %7 = vsyncpa [#allocation4], 0
    // Predicated region
    $region2: #{tpu_custom_call.1} parent=1 // pred_check
      _
    $region3: #{tpu_custom_call.1} parent=1 // pred_check_branch
      %9 = sbr.rel (0) target = $region5
    $region4: #{tpu_custom_call.1} parent=1 // pred_region
      %s11 = ssub.s32 128, 128
      %12 = vsyncadd [#allocation3], %s11
      %s14 = sshll.u32 [#allocation2], 4
      %s15 = int_to_ptr.vmem [resolvable:$true] %s14
      %17 = dma.hbm_to_vmem [thread:$0]  %s0, 128, %s15, [#allocation3]
    $region5: #{tpu_custom_call.1} parent=1 // pred_fallthru
      _
    // Predicated region
    $region6: #{tpu_custom_call.1} parent=1 // pred_check
      _
    $region7: #{tpu_custom_call.1} parent=1 // pred_check_branch
      %19 = sbr.rel (0) target = $region9
    $region8: #{tpu_custom_call.1} parent=1 // pred_region
      %20 = dma.done [#allocation3], 128
    $region9: #{tpu_custom_call.1} parent=1 // pred_fallthru
      _
    %v21 = vld [vmem:[#allocation2] sm:$0xff]
    %22 = vst [vmem:[#allocation5] sm:$0xff] %v21
    // Predicated region
    $region10: #{tpu_custom_call.1} parent=1 // pred_check
      _
    $region11: #{tpu_custom_call.1} parent=1 // pred_check_branch
      %24 = sbr.rel (0) target = $region13
    $region12: #{tpu_custom_call.1} parent=1 // pred_region
      %s26 = ssub.s32 128, 128
      %27 = vsyncadd [#allocation4], %s26
      %s29 = sshll.u32 [#allocation5], 4
      %s30 = int_to_ptr.vmem [resolvable:$true] %s29
      %32 = dma.vmem_to_hbm [thread:$0]  %s30, 128, %s1, [#allocation4]
    $region13: #{tpu_custom_call.1} parent=1 // pred_fallthru
      _
    // Predicated region
    $region14: #{tpu_custom_call.1} parent=1 // pred_check
      _
    $region15: #{tpu_custom_call.1} parent=1 // pred_check_branch
      %34 = sbr.rel (0) target = $region17
    $region16: #{tpu_custom_call.1} parent=1 // pred_region
      %35 = dma.done [#allocation4], 128
    $region17: #{tpu_custom_call.1} parent=1 // pred_fallthru
      _
    %36 = vsyncpa [#allocation3], 1
    %37 = vsyncpa [#allocation4], 1

</llo_original>
